<compile_context>
chip_gen: v6e
topology: v6e:2x2x1
jax: 0.10.0
libtpu: 0.0.40
codegen_flags: <defaults>
</compile_context>

<pallas_src>
import jax
import jax.numpy as jnp
from jax.experimental import pallas as pl
from jax.experimental.pallas import tpu as pltpu


def _make_unet3d_kernel(Cmid, Cout, tile_mp):
    def kernel(win_ref, wenc_ref, benc_ref, wdec_ref, bdec_ref, out_ref):
        # win_ref : (K=64*Cin, tile_mp)   shared 4x4x4 windows, voxels on lanes
        # wenc_ref: (8*Cmid, K)           scattered Conv3d weights, rows (a, c)
        # Conv3d(k=3, pad=1) for all 8 voxels of every pool window: one matmul.
        conv = jnp.dot(wenc_ref[...], win_ref[...],
                       preferred_element_type=jnp.float32)        # (8*Cmid, tile_mp)

        # MaxPool3d(2): balanced depth-3 elementwise max tree over the 8 pool
        # positions (leading-dim split -> no relayout, pure VPU work).
        t = conv.reshape(8, Cmid, tile_mp)
        m = jnp.maximum(
            jnp.maximum(jnp.maximum(t[0], t[1]), jnp.maximum(t[2], t[3])),
            jnp.maximum(jnp.maximum(t[4], t[5]), jnp.maximum(t[6], t[7])))

        # Bias + ReLU commute with the max (shared over the window, monotone):
        # apply them once per pooled voxel, after the pooling.
        pooled = jnp.maximum(m + benc_ref[...], 0.0)               # (Cmid, tile_mp)

        # ConvTranspose3d(k=2, s=2) == dense (Cout*8, Cmid) matmul; bias and
        # sigmoid run on exactly the output elements (no replicated lanes).
        dec = jnp.dot(wdec_ref[...], pooled,
                      preferred_element_type=jnp.float32) + bdec_ref[...]
        out_ref[...] = jax.nn.sigmoid(dec)                         # (Cout*8, tile_mp)

    return kernel


def _auto_tile_mp(Mp, n_batch):
    """Largest multiple-of-128 divisor of Mp up to 4096 (lane-dense, big DMAs)."""
    best = 0
    d = 128
    while d <= min(Mp, 4096):
        if Mp % d == 0:
            best = d
        d += 128
    if best == 0:
        return Mp                      # small / awkward volume: one full tile
    if n_batch == 1 and Mp == best and best % 256 == 0:
        best //= 2                     # keep >=2 parallel grid steps for v7x megacore
    return best


def unet3d_forward(x_ncdhw, wconv, bconv, wdec, bdec, *, tile_mp=None):
    """x_ncdhw: (N, Cin, D, H, W) float32.  Returns (N, Cout, D, H, W)."""
    N, Cin, D, H, W = x_ncdhw.shape
    assert D % 2 == 0 and H % 2 == 0 and W % 2 == 0, "MaxPool3d(2) needs even D/H/W"
    Cmid = wconv.shape[-1]
    Cout = wdec.shape[1]
    Dp, Hp, Wp = D // 2, H // 2, W // 2
    Mp = Dp * Hp * Wp
    K = 64 * Cin                       # one 4x4x4 window (x Cin) per pooled voxel

    if tile_mp is None:
        tile_mp = _auto_tile_mp(Mp, N)
    assert Mp % tile_mp == 0, "tile_mp must divide Dp*Hp*Wp"
    T = Mp // tile_mp

    # ---- glue (pure data movement): shared 4x4x4 windows, voxels on lanes ----
    x = jnp.transpose(x_ncdhw, (0, 2, 3, 4, 1)).astype(jnp.float32)      # NDHWC
    xp = jnp.pad(x, ((0, 0), (1, 1), (1, 1), (1, 1), (0, 0)))            # padding=1
    taps = []
    for iz in range(4):
        for iy in range(4):
            for ix in range(4):
                taps.append(xp[:, iz:iz + D:2, iy:iy + H:2, ix:ix + W:2, :])
    win = jnp.stack(taps, axis=1)                     # (N, 64, Dp, Hp, Wp, Cin)
    win = jnp.moveaxis(win, -1, 2)                    # (N, 64, Cin, Dp, Hp, Wp)
    win = win.reshape(N, K, Mp)
    win = win.reshape(N, K, T, tile_mp).transpose(0, 2, 1, 3)   # (N, T, K, tile_mp)

    # ---- parameters reshaped for the in-kernel matmuls ----
    # wenc[(a, c), (iz, iy, ix, ci)] = wconv[iz-az, iy-ay, ix-ax, ci, c] if valid
    wconv_t = jnp.transpose(wconv.astype(jnp.float32), (4, 0, 1, 2, 3))  # (Cmid,3,3,3,Cin)
    blocks = []
    for az in range(2):
        for ay in range(2):
            for ax in range(2):
                blocks.append(jnp.pad(
                    wconv_t, ((0, 0), (az, 1 - az), (ay, 1 - ay), (ax, 1 - ax), (0, 0))))
    wenc = jnp.stack(blocks, axis=0).reshape(8 * Cmid, K)                # rows (a, c)
    benc = bconv.reshape(Cmid, 1).astype(jnp.float32)
    wdecT = jnp.transpose(wdec.astype(jnp.float32),
                          (1, 2, 3, 4, 0)).reshape(Cout * 8, Cmid)       # rows (co,kd,kh,kw)
    bdecT = jnp.repeat(bdec.astype(jnp.float32), 8).reshape(Cout * 8, 1)

    kernel = _make_unet3d_kernel(Cmid, Cout, tile_mp)

    # ---- VMEM budget from the actual tiles (double-buffered) + intermediates ----
    in_tile = K * tile_mp * 4
    out_tile = Cout * 8 * tile_mp * 4
    weights = (8 * Cmid * K + Cmid + Cout * 8 * Cmid + Cout * 8) * 4
    interm = (8 * Cmid + Cmid + Cout * 8) * tile_mp * 4
    need = 2 * in_tile + 2 * out_tile + 2 * weights + interm
    vmem_limit = int(min(48 << 20, max(16 << 20, 2 * need)))   # cap well under v7x 64 MiB

    out = pl.pallas_call(
        kernel,
        out_shape=jax.ShapeDtypeStruct((N, T, Cout * 8, tile_mp), jnp.float32),
        grid_spec=pltpu.PrefetchScalarGridSpec(
            num_scalar_prefetch=0,
            grid=(N, T),
            in_specs=[
                # None == squeezed: batch/tile dims dropped from the kernel view
                pl.BlockSpec((None, None, K, tile_mp), lambda n, t: (n, t, 0, 0)),
                pl.BlockSpec((8 * Cmid, K), lambda n, t: (0, 0)),
                pl.BlockSpec((Cmid, 1), lambda n, t: (0, 0)),
                pl.BlockSpec((Cout * 8, Cmid), lambda n, t: (0, 0)),
                pl.BlockSpec((Cout * 8, 1), lambda n, t: (0, 0)),
            ],
            out_specs=pl.BlockSpec((None, None, Cout * 8, tile_mp),
                                   lambda n, t: (n, t, 0, 0)),
        ),
        compiler_params=pltpu.CompilerParams(
            dimension_semantics=("parallel", "parallel"),
            vmem_limit_bytes=vmem_limit),
    )(win, wenc, benc, wdecT, bdecT)

    # ---- glue: un-block (t, co, kd, kh, kw, p) -> NCDHW ----
    o = out.reshape(N, T, Cout, 2, 2, 2, tile_mp)
    o = jnp.transpose(o, (0, 2, 1, 6, 3, 4, 5))            # (N, Cout, T, p, kd, kh, kw)
    o = o.reshape(N, Cout, Dp, Hp, Wp, 2, 2, 2)
    o = jnp.transpose(o, (0, 1, 2, 5, 3, 6, 4, 7))         # (N, Cout, Dp,2, Hp,2, Wp,2)
    return o.reshape(N, Cout, D, H, W)


def ref_forward(x_ncdhw, wconv, bconv, wdec, bdec):
    """Pure-JAX reference of the PyTorch forward pass (for verification)."""
    N, Cin, D, H, W = x_ncdhw.shape
    Cmid = wconv.shape[-1]
    Cout = wdec.shape[1]
    x = jnp.transpose(x_ncdhw, (0, 2, 3, 4, 1)).astype(jnp.float32)
    xp = jnp.pad(x, ((0, 0), (1, 1), (1, 1), (1, 1), (0, 0)))
    acc = jnp.zeros((N, D, H, W, Cmid), jnp.float32)
    for dz in range(3):
        for dy in range(3):
            for dx in range(3):
                acc = acc + jnp.einsum(
                    'ndhwc,co->ndhwo',
                    xp[:, dz:dz + D, dy:dy + H, dx:dx + W, :],
                    wconv[dz, dy, dx])
    conv = jnp.maximum(acc + bconv, 0.0)
    pooled = conv.reshape(N, D // 2, 2, H // 2, 2, W // 2, 2, Cmid).max(axis=(2, 4, 6))
    out = jnp.einsum('ndhwc,coxyz->ndhwoxyz', pooled, wdec)
    out = out + bdec[None, None, None, None, :, None, None, None]
    out = jax.nn.sigmoid(out)
    out = jnp.transpose(out, (0, 4, 1, 5, 2, 6, 3, 7)).reshape(N, Cout, D, H, W)
    return out


if __name__ == "__main__":
    key = jax.random.PRNGKey(0)
    k1, k2, k3, k4, k5, k6 = jax.random.split(key, 6)

    N, Cin = 2, 1
    Cmid, Cout = 32, 1

    # Conv3d(in=1, out=32, k=3) weight stored as (kD,kH,kW,Cin,Cout); bias (Cout,)
    wconv = jax.random.normal(k2, (3, 3, 3, Cin, Cmid), jnp.float32) * 0.2
    bconv = jax.random.normal(k3, (Cmid,), jnp.float32) * 0.1
    # ConvTranspose3d(in=32, out=1, k=2) weight (Cin, Cout, kD, kH, kW); bias (Cout,)
    wdec = jax.random.normal(k4, (Cmid, Cout, 2, 2, 2), jnp.float32) * 0.2
    bdec = jax.random.normal(k5, (Cout,), jnp.float32) * 0.1

    # Check 1: original small volume (single tile per batch element).
    D = H = W = 8
    x = jax.random.normal(k1, (N, Cin, D, H, W), jnp.float32)
    out = jax.block_until_ready(unet3d_forward(x, wconv, bconv, wdec, bdec))
    ref = ref_forward(x, wconv, bconv, wdec, bdec)
    assert out.shape == (N, Cout, D, H, W)
    assert jnp.allclose(out, ref, atol=1e-5, rtol=1e-5)

    # Check 2: larger volume exercising the multi-tile (T>1), lane-dense path.
    D = H = W = 16
    x2 = jax.random.normal(k6, (N, Cin, D, H, W), jnp.float32)
    out2 = jax.block_until_ready(
        unet3d_forward(x2, wconv, bconv, wdec, bdec, tile_mp=256))
    ref2 = ref_forward(x2, wconv, bconv, wdec, bdec)
    assert out2.shape == (N, Cout, D, H, W)
    assert jnp.allclose(out2, ref2, atol=1e-5, rtol=1e-5)

    print("KERNEL_OK")
</pallas_src>

<mosaic_0001>
module attributes {stable_mosaic.version = 11 : i64} {
  func.func @kernel(%arg0: i32, %arg1: i32, %arg2: memref<1x1x64x64xf32, #tpu.memory_space<vmem>>, %arg3: memref<256x64xf32, #tpu.memory_space<vmem>>, %arg4: memref<32x1xf32, #tpu.memory_space<vmem>>, %arg5: memref<8x32xf32, #tpu.memory_space<vmem>>, %arg6: memref<8x1xf32, #tpu.memory_space<vmem>>, %arg7: memref<1x1x8x64xf32, #tpu.memory_space<vmem>>) attributes {dimension_semantics = [#tpu.dimension_semantics<parallel>, #tpu.dimension_semantics<parallel>], iteration_bounds = array<i64: 2, 1>, scalar_prefetch = 0 : i64, scratch_operands = 0 : i64, tpu.core_type = #tpu.core_type<tc>, window_params = [{transform_indices = @transform_0, window_bounds = array<i64: 1, 1, 64, 64>}, {pipeline_mode = #tpu.pipeline_mode<synchronous>, transform_indices = @transform_1, window_bounds = array<i64: 256, 64>}, {pipeline_mode = #tpu.pipeline_mode<synchronous>, transform_indices = @transform_2, window_bounds = array<i64: 32, 1>}, {pipeline_mode = #tpu.pipeline_mode<synchronous>, transform_indices = @transform_3, window_bounds = array<i64: 8, 32>}, {pipeline_mode = #tpu.pipeline_mode<synchronous>, transform_indices = @transform_4, window_bounds = array<i64: 8, 1>}, {transform_indices = @transform_5, window_bounds = array<i64: 1, 1, 8, 64>}]} {
    %c0 = arith.constant 0 : index
    %c0_0 = arith.constant 0 : index
    %0 = vector.load %arg3[%c0, %c0_0] : memref<256x64xf32, #tpu.memory_space<vmem>>, vector<256x64xf32>
    %c0_1 = arith.constant 0 : index
    %c0_2 = arith.constant 0 : index
    %c0_3 = arith.constant 0 : index
    %c0_4 = arith.constant 0 : index
    %1 = vector.load %arg2[%c0_1, %c0_2, %c0_3, %c0_4] : memref<1x1x64x64xf32, #tpu.memory_space<vmem>>, vector<1x1x64x64xf32>
    %2 = vector.shape_cast %1 : vector<1x1x64x64xf32> to vector<64x64xf32>
    %cst = arith.constant dense<0.000000e+00> : vector<256x64xf32>
    %3 = tpu.matmul %0, %2, %cst {dimension_numbers = #tpu.dot_dimension_numbers<[1], [0], [0], [1], [0, 0, 1, 1], [], []>} : vector<256x64xf32>, vector<64x64xf32>, vector<256x64xf32> -> vector<256x64xf32>
    %4 = vector.shape_cast %3 : vector<256x64xf32> to vector<8x32x64xf32>
    %5 = vector.extract_strided_slice %4 {offsets = [0, 0, 0], sizes = [1, 32, 64], strides = [1, 1, 1]} : vector<8x32x64xf32> to vector<1x32x64xf32>
    %6 = vector.shape_cast %5 : vector<1x32x64xf32> to vector<32x64xf32>
    %7 = vector.extract_strided_slice %4 {offsets = [1, 0, 0], sizes = [1, 32, 64], strides = [1, 1, 1]} : vector<8x32x64xf32> to vector<1x32x64xf32>
    %8 = vector.shape_cast %7 : vector<1x32x64xf32> to vector<32x64xf32>
    %9 = arith.maximumf %6, %8 : vector<32x64xf32>
    %10 = vector.extract_strided_slice %4 {offsets = [2, 0, 0], sizes = [1, 32, 64], strides = [1, 1, 1]} : vector<8x32x64xf32> to vector<1x32x64xf32>
    %11 = vector.shape_cast %10 : vector<1x32x64xf32> to vector<32x64xf32>
    %12 = vector.extract_strided_slice %4 {offsets = [3, 0, 0], sizes = [1, 32, 64], strides = [1, 1, 1]} : vector<8x32x64xf32> to vector<1x32x64xf32>
    %13 = vector.shape_cast %12 : vector<1x32x64xf32> to vector<32x64xf32>
    %14 = arith.maximumf %11, %13 : vector<32x64xf32>
    %15 = arith.maximumf %9, %14 : vector<32x64xf32>
    %16 = vector.extract_strided_slice %4 {offsets = [4, 0, 0], sizes = [1, 32, 64], strides = [1, 1, 1]} : vector<8x32x64xf32> to vector<1x32x64xf32>
    %17 = vector.shape_cast %16 : vector<1x32x64xf32> to vector<32x64xf32>
    %18 = vector.extract_strided_slice %4 {offsets = [5, 0, 0], sizes = [1, 32, 64], strides = [1, 1, 1]} : vector<8x32x64xf32> to vector<1x32x64xf32>
    %19 = vector.shape_cast %18 : vector<1x32x64xf32> to vector<32x64xf32>
    %20 = arith.maximumf %17, %19 : vector<32x64xf32>
    %21 = vector.extract_strided_slice %4 {offsets = [6, 0, 0], sizes = [1, 32, 64], strides = [1, 1, 1]} : vector<8x32x64xf32> to vector<1x32x64xf32>
    %22 = vector.shape_cast %21 : vector<1x32x64xf32> to vector<32x64xf32>
    %23 = vector.extract_strided_slice %4 {offsets = [7, 0, 0], sizes = [1, 32, 64], strides = [1, 1, 1]} : vector<8x32x64xf32> to vector<1x32x64xf32>
    %24 = vector.shape_cast %23 : vector<1x32x64xf32> to vector<32x64xf32>
    %25 = arith.maximumf %22, %24 : vector<32x64xf32>
    %26 = arith.maximumf %20, %25 : vector<32x64xf32>
    %27 = arith.maximumf %15, %26 : vector<32x64xf32>
    %c0_5 = arith.constant 0 : index
    %c0_6 = arith.constant 0 : index
    %28 = vector.load %arg4[%c0_5, %c0_6] : memref<32x1xf32, #tpu.memory_space<vmem>>, vector<32x1xf32>
    %29 = vector.broadcast %28 : vector<32x1xf32> to vector<32x64xf32>
    %30 = arith.addf %27, %29 : vector<32x64xf32>
    %cst_7 = arith.constant 0.000000e+00 : f32
    %31 = vector.broadcast %cst_7 : f32 to vector<32x64xf32>
    %32 = arith.maximumf %30, %31 : vector<32x64xf32>
    %c0_8 = arith.constant 0 : index
    %c0_9 = arith.constant 0 : index
    %33 = vector.load %arg5[%c0_8, %c0_9] : memref<8x32xf32, #tpu.memory_space<vmem>>, vector<8x32xf32>
    %cst_10 = arith.constant dense<0.000000e+00> : vector<8x64xf32>
    %34 = tpu.matmul %33, %32, %cst_10 {dimension_numbers = #tpu.dot_dimension_numbers<[1], [0], [0], [1], [0, 0, 1, 1], [], []>} : vector<8x32xf32>, vector<32x64xf32>, vector<8x64xf32> -> vector<8x64xf32>
    %c0_11 = arith.constant 0 : index
    %c0_12 = arith.constant 0 : index
    %35 = vector.load %arg6[%c0_11, %c0_12] : memref<8x1xf32, #tpu.memory_space<vmem>>, vector<8x1xf32>
    %36 = vector.broadcast %35 : vector<8x1xf32> to vector<8x64xf32>
    %37 = arith.addf %34, %36 : vector<8x64xf32>
    %38 = arith.negf %37 : vector<8x64xf32>
    %39 = math.exp %38 : vector<8x64xf32>
    %cst_13 = arith.constant 1.000000e+00 : f32
    %40 = vector.broadcast %cst_13 : f32 to vector<8x64xf32>
    %41 = arith.addf %40, %39 : vector<8x64xf32>
    %42 = arith.divf %40, %41 : vector<8x64xf32>
    %c0_14 = arith.constant 0 : index
    %c0_15 = arith.constant 0 : index
    %c0_16 = arith.constant 0 : index
    %c0_17 = arith.constant 0 : index
    %43 = vector.load %arg7[%c0_14, %c0_15, %c0_16, %c0_17] : memref<1x1x8x64xf32, #tpu.memory_space<vmem>>, vector<1x1x8x64xf32>
    %44 = vector.shape_cast %43 : vector<1x1x8x64xf32> to vector<8x64xf32>
    %45 = vector.shape_cast %42 : vector<8x64xf32> to vector<1x1x8x64xf32>
    tpu.vector_store %arg7[%c0_14, %c0_15, %c0_16, %c0_17], %45 {strides = array<i32>} : memref<1x1x8x64xf32, #tpu.memory_space<vmem>>, vector<1x1x8x64xf32>,
    return
  }
  func.func @transform_0(%arg0: i32, %arg1: i32) -> (i32, i32, i32, i32) {
    %c0_i32 = arith.constant 0 : i32
    %c0_i32_0 = arith.constant 0 : i32
    %c0_i32_1 = arith.constant 0 : i32
    return %arg0, %arg1, %c0_i32, %c0_i32_0 : i32, i32, i32, i32
  }
  func.func @transform_1(%arg0: i32, %arg1: i32) -> (i32, i32) {
    %c0_i32 = arith.constant 0 : i32
    %c0_i32_0 = arith.constant 0 : i32
    %c0_i32_1 = arith.constant 0 : i32
    return %c0_i32, %c0_i32_0 : i32, i32
  }
  func.func @transform_2(%arg0: i32, %arg1: i32) -> (i32, i32) {
    %c0_i32 = arith.constant 0 : i32
    %c0_i32_0 = arith.constant 0 : i32
    %c0_i32_1 = arith.constant 0 : i32
    return %c0_i32, %c0_i32_0 : i32, i32
  }
  func.func @transform_3(%arg0: i32, %arg1: i32) -> (i32, i32) {
    %c0_i32 = arith.constant 0 : i32
    %c0_i32_0 = arith.constant 0 : i32
    %c0_i32_1 = arith.constant 0 : i32
    return %c0_i32, %c0_i32_0 : i32, i32
  }
  func.func @transform_4(%arg0: i32, %arg1: i32) -> (i32, i32) {
    %c0_i32 = arith.constant 0 : i32
    %c0_i32_0 = arith.constant 0 : i32
    %c0_i32_1 = arith.constant 0 : i32
    return %c0_i32, %c0_i32_0 : i32, i32
  }
  func.func @transform_5(%arg0: i32, %arg1: i32) -> (i32, i32, i32, i32) {
    %c0_i32 = arith.constant 0 : i32
    %c0_i32_0 = arith.constant 0 : i32
    %c0_i32_1 = arith.constant 0 : i32
    return %arg0, %arg1, %c0_i32, %c0_i32_0 : i32, i32, i32, i32
  }
}

</mosaic_0001>

<llo_original>
// kernel: tpu_custom_call.1
$region0: #{tpu_custom_call.1}
  #allocation0 [shape = 'u32[]', space=smem, size = 0x4, offset = 0x4, fixed_abs, tag = 'smem constant byte address 0x4 - core index']
  #allocation1 [shape = 'u32[144,128]{1,0:T(1,128)}', space=vmem, size = 0x12000, scoped, tag = 'internal scratch']
  %s0 = inlined_call_operand.vmem [shape: f32[2,1,64,64], index: 0, kind: input, shape index: {}]
  %s1 = inlined_call_operand.vmem [shape: f32[256,64], index: 1, kind: input, shape index: {}]
  %s2 = inlined_call_operand.vmem [shape: f32[32,1], index: 2, kind: input, shape index: {}]
  %s3 = inlined_call_operand.vmem [shape: f32[8,32], index: 3, kind: input, shape index: {}]
  %s4 = inlined_call_operand.vmem [shape: f32[8,1], index: 4, kind: input, shape index: {}]
  %s5 = inlined_call_operand.hbm [shape: f32[2,1,8,64], index: 5, kind: output, shape index: {}]
  %s6 = sld [smem:[#allocation0]]
  $region53: #{tpu_custom_call.1} parent=0
    _
  %s8 = ssub.s32 1, %s6
  %s9 = scalar_select 0, %s8, %s6
  $region1: #{tpu_custom_call.1} parent=0
    #allocation2 [shape = 'u8[8192]{0}', space=vmem, size = 0x2000, scoped, tag = 'output window, operand 0']
    #allocation3 [shape = 's32[2]{0}', space=sflag, size = 0x8, scoped, tag = 'scoped memory for tpu_custom_call.1']
    %10 = vsyncpa [#allocation3], 0
    %s11 = scalar_lea.sflag [#allocation3], 1
    %12 = vsyncpa %s11, 0
    loop: start=0, step=1, limit=4
    $region2: #{tpu_custom_call.1} parent=1 // loop_pre_header
      _
    $region3: #{tpu_custom_call.1} parent=1 // loop_header
      %s14 = sphi 0, %s18
      %p15 = scmp.ge.s32.totalorder %s14, 4
      %s21 = sphi 0, %s33
      %s22 = sphi 0, %s29
      %s23 = sphi 0, %s21
      %s24 = sphi 0, %s22
      %s25 = sphi 0, %s23
      %s26 = sphi 0, %s24
      %s38 = sphi 0, %s40
      %s41 = sphi 0, %s38
      %s42 = sphi 0, %s41
      %s58 = sphi 0, %s42
      %s62 = sphi 0, %s62
      %s64 = sphi 0, %s62
      %s65 = sphi 0, %s64
      %s79 = sphi 0, %s65
      %s83 = sphi 0, %s83
      %s85 = sphi 0, %s83
      %s86 = sphi 0, %s85
      %s100 = sphi 0, %s86
      %s104 = sphi 0, %s104
      %s106 = sphi 0, %s104
      %s107 = sphi 0, %s106
      %s121 = sphi 0, %s107
      %s125 = sphi 0, %s125
      %s127 = sphi 0, %s125
      %s128 = sphi 0, %s127
      %s142 = sphi 0, %s128
      %s150 = sphi 0, %s152
      %s153 = sphi 0, %s150
      %s154 = sphi 0, %s153
      %s170 = sphi 0, %s154
    $region4: #{tpu_custom_call.1} parent=1 // loop_header_branch
      %17 = sbr.rel (%p15) target = $region8
    $region5: #{tpu_custom_call.1} parent=1 // loop_body
      %s19 = ssub.s32 %s14, 1
      %s20 = ssub.s32 %s14, 2
      %s27 = sadd.s32 1, %s22
      %p28 = scmp.ge.s32.totalorder %s27, 1
      %s29 = scalar_select %p28, 0, %s27
      %s30 = sadd.s32 1, %s21
      %s31 = scalar_select %p28, %s30, %s21
      %p32 = scmp.ge.s32.totalorder %s31, 2
      %s33 = scalar_select %p32, 0, %s31
      %s34 = ssub.s32 %s21, %s33
      %s35 = ssub.s32 %s22, %s29
      %s36 = sor.u32 %s34, %s35
      %p37 = scmp.eq.s32.totalorder %s36, 0
      %s39 = sadd.s32 %s38, 1
      %s40 = scalar_select %p37, %s38, %s39
      %p43 = pneg %p37
      %p44 = scmp.eq.s32.totalorder %s14, 1
      %p45 = por %p43, %p44
      %p46 = scmp.ne.s32.totalorder %s38, %s41
      %p47 = scmp.eq.s32.totalorder %s14, 0
      %p48 = por %p46, %p47
      %p49 = scmp.ne.s32.totalorder %s38, %s41
      %p50 = scmp.eq.s32.totalorder %s19, 1
      %p51 = por %p49, %p50
      %p52 = scmp.ne.s32.totalorder %s41, %s42
      %p53 = scmp.eq.s32.totalorder %s19, 0
      %p54 = por %p52, %p53
      %p55 = scmp.ne.s32.totalorder %s41, %s42
      %p56 = scmp.eq.s32.totalorder %s20, 1
      %p57 = por %p55, %p56
      %p59 = scmp.ne.s32.totalorder %s42, %s58
      %p60 = scmp.eq.s32.totalorder %s20, 0
      %p61 = por %p59, %p60
      %s63 = sadd.s32 %s62, 1
      %p66 = scmp.eq.s32.totalorder %s14, 1
      %p67 = scmp.ne.s32.totalorder %s62, %s64
      %p68 = scmp.eq.s32.totalorder %s14, 0
      %p69 = por %p67, %p68
      %p70 = scmp.ne.s32.totalorder %s62, %s64
      %p71 = scmp.eq.s32.totalorder %s19, 1
      %p72 = por %p70, %p71
      %p73 = scmp.ne.s32.totalorder %s64, %s65
      %p74 = scmp.eq.s32.totalorder %s19, 0
      %p75 = por %p73, %p74
      %p76 = scmp.ne.s32.totalorder %s64, %s65
      %p77 = scmp.eq.s32.totalorder %s20, 1
      %p78 = por %p76, %p77
      %p80 = scmp.ne.s32.totalorder %s65, %s79
      %p81 = scmp.eq.s32.totalorder %s20, 0
      %p82 = por %p80, %p81
      %s84 = sadd.s32 %s83, 1
      %p87 = scmp.eq.s32.totalorder %s14, 1
      %p88 = scmp.ne.s32.totalorder %s83, %s85
      %p89 = scmp.eq.s32.totalorder %s14, 0
      %p90 = por %p88, %p89
      %p91 = scmp.ne.s32.totalorder %s83, %s85
      %p92 = scmp.eq.s32.totalorder %s19, 1
      %p93 = por %p91, %p92
      %p94 = scmp.ne.s32.totalorder %s85, %s86
      %p95 = scmp.eq.s32.totalorder %s19, 0
      %p96 = por %p94, %p95
      %p97 = scmp.ne.s32.totalorder %s85, %s86
      %p98 = scmp.eq.s32.totalorder %s20, 1
      %p99 = por %p97, %p98
      %p101 = scmp.ne.s32.totalorder %s86, %s100
      %p102 = scmp.eq.s32.totalorder %s20, 0
      %p103 = por %p101, %p102
      %s105 = sadd.s32 %s104, 1
      %p108 = scmp.eq.s32.totalorder %s14, 1
      %p109 = scmp.ne.s32.totalorder %s104, %s106
      %p110 = scmp.eq.s32.totalorder %s14, 0
      %p111 = por %p109, %p110
      %p112 = scmp.ne.s32.totalorder %s104, %s106
      %p113 = scmp.eq.s32.totalorder %s19, 1
      %p114 = por %p112, %p113
      %p115 = scmp.ne.s32.totalorder %s106, %s107
      %p116 = scmp.eq.s32.totalorder %s19, 0
      %p117 = por %p115, %p116
      %p118 = scmp.ne.s32.totalorder %s106, %s107
      %p119 = scmp.eq.s32.totalorder %s20, 1
      %p120 = por %p118, %p119
      %p122 = scmp.ne.s32.totalorder %s107, %s121
      %p123 = scmp.eq.s32.totalorder %s20, 0
      %p124 = por %p122, %p123
      %s126 = sadd.s32 %s125, 1
      %p129 = scmp.eq.s32.totalorder %s14, 1
      %p130 = scmp.ne.s32.totalorder %s125, %s127
      %p131 = scmp.eq.s32.totalorder %s14, 0
      %p132 = por %p130, %p131
      %p133 = scmp.ne.s32.totalorder %s125, %s127
      %p134 = scmp.eq.s32.totalorder %s19, 1
      %p135 = por %p133, %p134
      %p136 = scmp.ne.s32.totalorder %s127, %s128
      %p137 = scmp.eq.s32.totalorder %s19, 0
      %p138 = por %p136, %p137
      %p139 = scmp.ne.s32.totalorder %s127, %s128
      %p140 = scmp.eq.s32.totalorder %s20, 1
      %p141 = por %p139, %p140
      %p143 = scmp.ne.s32.totalorder %s128, %s142
      %p144 = scmp.eq.s32.totalorder %s20, 0
      %p145 = por %p143, %p144
      %s146 = ssub.s32 %s21, %s33
      %s147 = ssub.s32 %s22, %s29
      %s148 = sor.u32 %s146, %s147
      %p149 = scmp.eq.s32.totalorder %s148, 0
      %s151 = sadd.s32 %s150, 1
      %s152 = scalar_select %p149, %s150, %s151
      %p155 = pneg %p149
      %p156 = scmp.eq.s32.totalorder %s14, 1
      %p157 = por %p155, %p156
      %p158 = scmp.ne.s32.totalorder %s150, %s153
      %p159 = scmp.eq.s32.totalorder %s14, 0
      %p160 = por %p158, %p159
      %p161 = scmp.ne.s32.totalorder %s150, %s153
      %p162 = scmp.eq.s32.totalorder %s19, 1
      %p163 = por %p161, %p162
      %p164 = scmp.ne.s32.totalorder %s153, %s154
      %p165 = scmp.eq.s32.totalorder %s19, 0
      %p166 = por %p164, %p165
      %p167 = scmp.ne.s32.totalorder %s153, %s154
      %p168 = scmp.eq.s32.totalorder %s20, 1
      %p169 = por %p167, %p168
      %p171 = scmp.ne.s32.totalorder %s154, %s170
      %p172 = scmp.eq.s32.totalorder %s20, 0
      %p173 = por %p171, %p172
      %p174 = scmp.le.s32.totalorder 1, %s14
      %p175 = scmp.lt.s32.totalorder %s14, 3
      %p176 = pnand %p174, %p175
      %p177 = pneg %p176
      // Predicated region
      $region9: #{tpu_custom_call.1} parent=5 // pred_check
        _
      $region10: #{tpu_custom_call.1} parent=5 // pred_check_branch
        %179 = sbr.rel (%p176) target = $region12
      $region11: #{tpu_custom_call.1} parent=5 // pred_region
        %s180 = ssub.s32 %s14, 1
        // Predicated region
        $region13: #{tpu_custom_call.1} parent=11 // pred_check
          %p181 = pneg %p75
        $region14: #{tpu_custom_call.1} parent=11 // pred_check_branch
          %183 = sbr.rel (%p181) target = $region16
        $region15: #{tpu_custom_call.1} parent=11 // pred_region
          _
        $region16: #{tpu_custom_call.1} parent=11 // pred_fallthru
          _
        // Predicated region
        $region17: #{tpu_custom_call.1} parent=11 // pred_check
          %p184 = pneg %p96
        $region18: #{tpu_custom_call.1} parent=11 // pred_check_branch
          %186 = sbr.rel (%p184) target = $region20
        $region19: #{tpu_custom_call.1} parent=11 // pred_region
          _
        $region20: #{tpu_custom_call.1} parent=11 // pred_fallthru
          _
        // Predicated region
        $region21: #{tpu_custom_call.1} parent=11 // pred_check
          %p187 = pneg %p117
        $region22: #{tpu_custom_call.1} parent=11 // pred_check_branch
          %189 = sbr.rel (%p187) target = $region24
        $region23: #{tpu_custom_call.1} parent=11 // pred_region
          _
        $region24: #{tpu_custom_call.1} parent=11 // pred_fallthru
          _
        // Predicated region
        $region25: #{tpu_custom_call.1} parent=11 // pred_check
          %p190 = pneg %p138
        $region26: #{tpu_custom_call.1} parent=11 // pred_check_branch
          %192 = sbr.rel (%p190) target = $region28
        $region27: #{tpu_custom_call.1} parent=11 // pred_region
          _
        $region28: #{tpu_custom_call.1} parent=11 // pred_fallthru
          _
      $region12: #{tpu_custom_call.1} parent=5 // pred_fallthru
        _
      %p193 = scmp.lt.s32.totalorder %s14, 2
      // Predicated region
      $region29: #{tpu_custom_call.1} parent=5 // pred_check
        %p194 = pneg %p193
      $region30: #{tpu_custom_call.1} parent=5 // pred_check_branch
        %196 = sbr.rel (%p194) target = $region32
      $region31: #{tpu_custom_call.1} parent=5 // pred_region
        // Predicated region
        $region33: #{tpu_custom_call.1} parent=31 // pred_check
          %p197 = pneg %p48
        $region34: #{tpu_custom_call.1} parent=31 // pred_check_branch
          %199 = sbr.rel (%p197) target = $region36
        $region35: #{tpu_custom_call.1} parent=31 // pred_region
          %p200 = scmp.lt.s32.totalorder %s21, 1
          %s201 = scalar_select %p200, %s21, 1
          %p202 = scmp.lt.s32.totalorder %s22, 0
          %s203 = scalar_select %p202, %s22, 0
          %s204 = smul.addr %s203, 8
          %s205 = smul.addr %s201, 8
          %s206 = sadd.s32 %s204, %s205
          %s207 = smul.addr %s206, 8
          %s208 = scalar_lea.vmem %s0, %s207
        $region36: #{tpu_custom_call.1} parent=31 // pred_fallthru
          _
      $region32: #{tpu_custom_call.1} parent=5 // pred_fallthru
        _
      %p209 = scmp.le.s32.totalorder 1, %s14
      %p210 = scmp.lt.s32.totalorder %s14, 3
      %p211 = pnand %p209, %p210
      %p212 = pneg %p211
      // Predicated region
      $region37: #{tpu_custom_call.1} parent=5 // pred_check
        _
      $region38: #{tpu_custom_call.1} parent=5 // pred_check_branch
        %214 = sbr.rel (%p211) target = $region40
      $region39: #{tpu_custom_call.1} parent=5 // pred_region
        %s215 = ssub.s32 %s14, 1
        %p216 = scmp.lt.s32.totalorder %s23, 1
        %s217 = scalar_select %p216, %s23, 1
        %p218 = scmp.lt.s32.totalorder %s24, 0
        %s219 = scalar_select %p218, %s24, 0
        %s220 = smul.addr %s219, 8
        %s221 = smul.addr %s217, 8
        %s222 = sadd.s32 %s220, %s221
        %s223 = smul.addr %s222, 8
        %s224 = scalar_lea.vmem %s0, %s223
        %p225 = pneg %p54
        %p226 = pneg %p51
        %p227 = pneg %p75
        %p228 = pneg %p72
        %p229 = pneg %p96
        %p230 = pneg %p93
        %p231 = pneg %p117
        %p232 = pneg %p114
        %p233 = pneg %p138
        %p234 = pneg %p135
        %p235 = pneg %p166
        %p236 = pneg %p163
        %s237 = sand.u32 %s153, 1
        %s238 = scalar_lea.sflag [#allocation3], %s237
        %s239 = sand.u32 %s153, 1
        %s240 = smul.addr %s239, 8
        %s241 = scalar_lea.vmem [#allocation2], %s240
        %p242 = scmp.lt.s32.totalorder %s23, 1
        %s243 = scalar_select %p242, %s23, 1
        %p244 = scmp.lt.s32.totalorder %s24, 0
        %s245 = scalar_select %p244, %s24, 0
        %s246 = smul.addr %s245, 8
        %s247 = smul.addr %s243, 8
        %s248 = sadd.s32 %s246, %s247
        %s249 = smul.addr %s248, 8
        %s250 = scalar_lea.vmem %s0, %s249
        %v251 = vld [vmem:[%s1] sm:$0xff]
        %v252 = vld [vmem:[%s1 + $0x8] sm:$0xff]
        %v253 = vld [vmem:[%s1 + $0x10] sm:$0xff]
        %v254 = vld [vmem:[%s1 + $0x18] sm:$0xff]
        %v255 = vld [vmem:[%s1 + $0x20] sm:$0xff]
        %v256 = vld [vmem:[%s1 + $0x28] sm:$0xff]
        %v257 = vld [vmem:[%s1 + $0x30] sm:$0xff]
        %v258 = vld [vmem:[%s1 + $0x38] sm:$0xff]
        %v259 = vld [vmem:[%s1 + $0x40] sm:$0xff]
        %v260 = vld [vmem:[%s1 + $0x48] sm:$0xff]
        %v261 = vld [vmem:[%s1 + $0x50] sm:$0xff]
        %v262 = vld [vmem:[%s1 + $0x58] sm:$0xff]
        %v263 = vld [vmem:[%s1 + $0x60] sm:$0xff]
        %v264 = vld [vmem:[%s1 + $0x68] sm:$0xff]
        %v265 = vld [vmem:[%s1 + $0x70] sm:$0xff]
        %v266 = vld [vmem:[%s1 + $0x78] sm:$0xff]
        %v267 = vld [vmem:[%s1 + $0x80] sm:$0xff]
        %v268 = vld [vmem:[%s1 + $0x88] sm:$0xff]
        %v269 = vld [vmem:[%s1 + $0x90] sm:$0xff]
        %v270 = vld [vmem:[%s1 + $0x98] sm:$0xff]
        %v271 = vld [vmem:[%s1 + $0xa0] sm:$0xff]
        %v272 = vld [vmem:[%s1 + $0xa8] sm:$0xff]
        %v273 = vld [vmem:[%s1 + $0xb0] sm:$0xff]
        %v274 = vld [vmem:[%s1 + $0xb8] sm:$0xff]
        %v275 = vld [vmem:[%s1 + $0xc0] sm:$0xff]
        %v276 = vld [vmem:[%s1 + $0xc8] sm:$0xff]
        %v277 = vld [vmem:[%s1 + $0xd0] sm:$0xff]
        %v278 = vld [vmem:[%s1 + $0xd8] sm:$0xff]
        %v279 = vld [vmem:[%s1 + $0xe0] sm:$0xff]
        %v280 = vld [vmem:[%s1 + $0xe8] sm:$0xff]
        %v281 = vld [vmem:[%s1 + $0xf0] sm:$0xff]
        %v282 = vld [vmem:[%s1 + $0xf8] sm:$0xff]
        %v283 = vld [vmem:[%s250] sm:$0xff]
        %v284 = vld [vmem:[%s250 + $0x8] sm:$0xff]
        %v285 = vld [vmem:[%s250 + $0x10] sm:$0xff]
        %v286 = vld [vmem:[%s250 + $0x18] sm:$0xff]
        %v287 = vld [vmem:[%s250 + $0x20] sm:$0xff]
        %v288 = vld [vmem:[%s250 + $0x28] sm:$0xff]
        %v289 = vld [vmem:[%s250 + $0x30] sm:$0xff]
        %v290 = vld [vmem:[%s250 + $0x38] sm:$0xff]
        %vm291 = vcmask 523264
        %v293 = vsel %vm291, %v251, 0
        %v296 = vsel %vm291, %v252, 0
        %v299 = vsel %vm291, %v253, 0
        %v302 = vsel %vm291, %v254, 0
        %v305 = vsel %vm291, %v255, 0
        %v308 = vsel %vm291, %v256, 0
        %v311 = vsel %vm291, %v257, 0
        %v314 = vsel %vm291, %v258, 0
        %v317 = vsel %vm291, %v259, 0
        %v320 = vsel %vm291, %v260, 0
        %v323 = vsel %vm291, %v261, 0
        %v326 = vsel %vm291, %v262, 0
        %v329 = vsel %vm291, %v263, 0
        %v332 = vsel %vm291, %v264, 0
        %v335 = vsel %vm291, %v265, 0
        %v338 = vsel %vm291, %v266, 0
        %v341 = vsel %vm291, %v267, 0
        %v344 = vsel %vm291, %v268, 0
        %v347 = vsel %vm291, %v269, 0
        %v350 = vsel %vm291, %v270, 0
        %v353 = vsel %vm291, %v271, 0
        %v356 = vsel %vm291, %v272, 0
        %v359 = vsel %vm291, %v273, 0
        %v362 = vsel %vm291, %v274, 0
        %v365 = vsel %vm291, %v275, 0
        %v368 = vsel %vm291, %v276, 0
        %v371 = vsel %vm291, %v277, 0
        %v374 = vsel %vm291, %v278, 0
        %v377 = vsel %vm291, %v279, 0
        %v380 = vsel %vm291, %v280, 0
        %v383 = vsel %vm291, %v281, 0
        %v386 = vsel %vm291, %v282, 0
        %388 = vmatprep.subr.mxu0 0.0
        %389 = vmatpush1.msra.mxu0 0.0
        %390 = vmatprep.subr.mxu0 0.0
        %391 = vmatpush1.msra.mxu0 0.0
        %392 = vmatprep.subr.mxu0 0.0
        %393 = vmatpush1.msra.mxu0 0.0
        %394 = vmatprep.subr.mxu0 0.0
        %395 = vmatpush1.msra.mxu0 0.0
        %396 = vmatprep.subr.mxu0 0.0
        %397 = vmatpush1.msra.mxu0 0.0
        %398 = vmatprep.subr.mxu0 0.0
        %399 = vmatpush1.msra.mxu0 0.0
        %400 = vmatprep.subr.mxu0 0.0
        %401 = vmatpush1.msra.mxu0 0.0
        %402 = vmatprep.subr.mxu0 0.0
        %403 = vmatpush1.msra.mxu0 0.0
        %404 = vmatprep.subr.mxu0 0.0
        %405 = vmatpush1.msra.mxu0 %v290
        %406 = vmatprep.subr.mxu0 0.0
        %407 = vmatpush1.msra.mxu0 %v289
        %408 = vmatprep.subr.mxu0 0.0
        %409 = vmatpush1.msra.mxu0 %v288
        %410 = vmatprep.subr.mxu0 0.0
        %411 = vmatpush1.msra.mxu0 %v287
        %412 = vmatprep.subr.mxu0 0.0
        %413 = vmatpush1.msra.mxu0 %v286
        %414 = vmatprep.subr.mxu0 0.0
        %415 = vmatpush1.msra.mxu0 %v285
        %416 = vmatprep.subr.mxu0 0.0
        %417 = vmatpush1.msra.mxu0 %v284
        %418 = vmatprep.subr.mxu0 0.0
        %419 = vmatpush1.msra.mxu0 %v283
        %420 = vmatprep.subr.mxu0 0.0
        %421 = vmatpush2.msra.mxu0 0.0
        %422 = vmatprep.subr.mxu0 0.0
        %423 = vmatpush2.msra.mxu0 0.0
        %424 = vmatprep.subr.mxu0 0.0
        %425 = vmatpush2.msra.mxu0 0.0
        %426 = vmatprep.subr.mxu0 0.0
        %427 = vmatpush2.msra.mxu0 0.0
        %428 = vmatprep.subr.mxu0 0.0
        %429 = vmatpush2.msra.mxu0 0.0
        %430 = vmatprep.subr.mxu0 0.0
        %431 = vmatpush2.msra.mxu0 0.0
        %432 = vmatprep.subr.mxu0 0.0
        %433 = vmatpush2.msra.mxu0 0.0
        %434 = vmatprep.subr.mxu0 0.0
        %435 = vmatpush2.msra.mxu0 0.0
        %436 = vmatprep.subr.mxu0 0.0
        %437 = vmatpush2.msra.mxu0 0.0
        %438 = vmatprep.subr.mxu0 0.0
        %439 = vmatpush2.msra.mxu0 0.0
        %440 = vmatprep.subr.mxu0 0.0
        %441 = vmatpush2.msra.mxu0 0.0
        %442 = vmatprep.subr.mxu0 0.0
        %443 = vmatpush2.msra.mxu0 0.0
        %444 = vmatprep.subr.mxu0 0.0
        %445 = vmatpush2.msra.mxu0 0.0
        %446 = vmatprep.subr.mxu0 0.0
        %447 = vmatpush2.msra.mxu0 0.0
        %448 = vmatprep.subr.mxu0 0.0
        %449 = vmatpush2.msra.mxu0 0.0
        %450 = vmatprep.subr.mxu0 0.0
        %451 = vmatpush2.msra.mxu0 0.0
        %452 = vmatprep.mubr.f32.mxu0 0.0
        %453 = vmatmul.mubr.f32.gmra.mxu0 %v293
        %v454 = vpop.f32.mrf.mxu0
        %v455 = vadd.f32 0.0, %v454
        %v456 = vpop.f32.mrf.mxu0
        %457 = vmatprep.mubr.f32.mxu0 0.0
        %458 = vmatmul.mubr.f32.gmra.mxu0 %v296
        %v459 = vpop.f32.mrf.mxu0
        %v460 = vadd.f32 0.0, %v459
        %v461 = vpop.f32.mrf.mxu0
        %462 = vmatprep.mubr.f32.mxu0 0.0
        %463 = vmatmul.mubr.f32.gmra.mxu0 %v299
        %v464 = vpop.f32.mrf.mxu0
        %v465 = vadd.f32 0.0, %v464
        %v466 = vpop.f32.mrf.mxu0
        %467 = vmatprep.mubr.f32.mxu0 0.0
        %468 = vmatmul.mubr.f32.gmra.mxu0 %v302
        %v469 = vpop.f32.mrf.mxu0
        %v470 = vadd.f32 0.0, %v469
        %v471 = vpop.f32.mrf.mxu0
        %472 = vmatprep.mubr.f32.mxu0 0.0
        %473 = vmatmul.mubr.f32.gmra.mxu0 %v305
        %v474 = vpop.f32.mrf.mxu0
        %v475 = vadd.f32 0.0, %v474
        %v476 = vpop.f32.mrf.mxu0
        %477 = vmatprep.mubr.f32.mxu0 0.0
        %478 = vmatmul.mubr.f32.gmra.mxu0 %v308
        %v479 = vpop.f32.mrf.mxu0
        %v480 = vadd.f32 0.0, %v479
        %v481 = vpop.f32.mrf.mxu0
        %482 = vmatprep.mubr.f32.mxu0 0.0
        %483 = vmatmul.mubr.f32.gmra.mxu0 %v311
        %v484 = vpop.f32.mrf.mxu0
        %v485 = vadd.f32 0.0, %v484
        %v486 = vpop.f32.mrf.mxu0
        %487 = vmatprep.mubr.f32.mxu0 0.0
        %488 = vmatmul.mubr.f32.gmra.mxu0 %v314
        %v489 = vpop.f32.mrf.mxu0
        %v490 = vadd.f32 0.0, %v489
        %v491 = vpop.f32.mrf.mxu0
        %492 = vmatprep.mubr.f32.mxu0 0.0
        %493 = vmatmul.mubr.f32.gmra.mxu0 %v317
        %v494 = vpop.f32.mrf.mxu0
        %v495 = vadd.f32 0.0, %v494
        %v496 = vpop.f32.mrf.mxu0
        %497 = vmatprep.mubr.f32.mxu0 0.0
        %498 = vmatmul.mubr.f32.gmra.mxu0 %v320
        %v499 = vpop.f32.mrf.mxu0
        %v500 = vadd.f32 0.0, %v499
        %v501 = vpop.f32.mrf.mxu0
        %502 = vmatprep.mubr.f32.mxu0 0.0
        %503 = vmatmul.mubr.f32.gmra.mxu0 %v323
        %v504 = vpop.f32.mrf.mxu0
        %v505 = vadd.f32 0.0, %v504
        %v506 = vpop.f32.mrf.mxu0
        %507 = vmatprep.mubr.f32.mxu0 0.0
        %508 = vmatmul.mubr.f32.gmra.mxu0 %v326
        %v509 = vpop.f32.mrf.mxu0
        %v510 = vadd.f32 0.0, %v509
        %v511 = vpop.f32.mrf.mxu0
        %512 = vmatprep.mubr.f32.mxu0 0.0
        %513 = vmatmul.mubr.f32.gmra.mxu0 %v329
        %v514 = vpop.f32.mrf.mxu0
        %v515 = vadd.f32 0.0, %v514
        %v516 = vpop.f32.mrf.mxu0
        %517 = vmatprep.mubr.f32.mxu0 0.0
        %518 = vmatmul.mubr.f32.gmra.mxu0 %v332
        %v519 = vpop.f32.mrf.mxu0
        %v520 = vadd.f32 0.0, %v519
        %v521 = vpop.f32.mrf.mxu0
        %522 = vmatprep.mubr.f32.mxu0 0.0
        %523 = vmatmul.mubr.f32.gmra.mxu0 %v335
        %v524 = vpop.f32.mrf.mxu0
        %v525 = vadd.f32 0.0, %v524
        %v526 = vpop.f32.mrf.mxu0
        %527 = vmatprep.mubr.f32.mxu0 0.0
        %528 = vmatmul.mubr.f32.gmra.mxu0 %v338
        %v529 = vpop.f32.mrf.mxu0
        %v530 = vadd.f32 0.0, %v529
        %v531 = vpop.f32.mrf.mxu0
        %532 = vmatprep.mubr.f32.mxu0 0.0
        %533 = vmatmul.mubr.f32.gmra.mxu0 %v341
        %v534 = vpop.f32.mrf.mxu0
        %v535 = vadd.f32 0.0, %v534
        %v536 = vpop.f32.mrf.mxu0
        %537 = vmatprep.mubr.f32.mxu0 0.0
        %538 = vmatmul.mubr.f32.gmra.mxu0 %v344
        %v539 = vpop.f32.mrf.mxu0
        %v540 = vadd.f32 0.0, %v539
        %v541 = vpop.f32.mrf.mxu0
        %542 = vmatprep.mubr.f32.mxu0 0.0
        %543 = vmatmul.mubr.f32.gmra.mxu0 %v347
        %v544 = vpop.f32.mrf.mxu0
        %v545 = vadd.f32 0.0, %v544
        %v546 = vpop.f32.mrf.mxu0
        %547 = vmatprep.mubr.f32.mxu0 0.0
        %548 = vmatmul.mubr.f32.gmra.mxu0 %v350
        %v549 = vpop.f32.mrf.mxu0
        %v550 = vadd.f32 0.0, %v549
        %v551 = vpop.f32.mrf.mxu0
        %552 = vmatprep.mubr.f32.mxu0 0.0
        %553 = vmatmul.mubr.f32.gmra.mxu0 %v353
        %v554 = vpop.f32.mrf.mxu0
        %v555 = vadd.f32 0.0, %v554
        %v556 = vpop.f32.mrf.mxu0
        %557 = vmatprep.mubr.f32.mxu0 0.0
        %558 = vmatmul.mubr.f32.gmra.mxu0 %v356
        %v559 = vpop.f32.mrf.mxu0
        %v560 = vadd.f32 0.0, %v559
        %v561 = vpop.f32.mrf.mxu0
        %562 = vmatprep.mubr.f32.mxu0 0.0
        %563 = vmatmul.mubr.f32.gmra.mxu0 %v359
        %v564 = vpop.f32.mrf.mxu0
        %v565 = vadd.f32 0.0, %v564
        %v566 = vpop.f32.mrf.mxu0
        %567 = vmatprep.mubr.f32.mxu0 0.0
        %568 = vmatmul.mubr.f32.gmra.mxu0 %v362
        %v569 = vpop.f32.mrf.mxu0
        %v570 = vadd.f32 0.0, %v569
        %v571 = vpop.f32.mrf.mxu0
        %572 = vmatprep.mubr.f32.mxu0 0.0
        %573 = vmatmul.mubr.f32.gmra.mxu0 %v365
        %v574 = vpop.f32.mrf.mxu0
        %v575 = vadd.f32 0.0, %v574
        %v576 = vpop.f32.mrf.mxu0
        %577 = vmatprep.mubr.f32.mxu0 0.0
        %578 = vmatmul.mubr.f32.gmra.mxu0 %v368
        %v579 = vpop.f32.mrf.mxu0
        %v580 = vadd.f32 0.0, %v579
        %v581 = vpop.f32.mrf.mxu0
        %582 = vmatprep.mubr.f32.mxu0 0.0
        %583 = vmatmul.mubr.f32.gmra.mxu0 %v371
        %v584 = vpop.f32.mrf.mxu0
        %v585 = vadd.f32 0.0, %v584
        %v586 = vpop.f32.mrf.mxu0
        %587 = vmatprep.mubr.f32.mxu0 0.0
        %588 = vmatmul.mubr.f32.gmra.mxu0 %v374
        %v589 = vpop.f32.mrf.mxu0
        %v590 = vadd.f32 0.0, %v589
        %v591 = vpop.f32.mrf.mxu0
        %592 = vmatprep.mubr.f32.mxu0 0.0
        %593 = vmatmul.mubr.f32.gmra.mxu0 %v377
        %v594 = vpop.f32.mrf.mxu0
        %v595 = vadd.f32 0.0, %v594
        %v596 = vpop.f32.mrf.mxu0
        %597 = vmatprep.mubr.f32.mxu0 0.0
        %598 = vmatmul.mubr.f32.gmra.mxu0 %v380
        %v599 = vpop.f32.mrf.mxu0
        %v600 = vadd.f32 0.0, %v599
        %v601 = vpop.f32.mrf.mxu0
        %602 = vmatprep.mubr.f32.mxu0 0.0
        %603 = vmatmul.mubr.f32.gmra.mxu0 %v383
        %v604 = vpop.f32.mrf.mxu0
        %v605 = vadd.f32 0.0, %v604
        %v606 = vpop.f32.mrf.mxu0
        %607 = vmatprep.mubr.f32.mxu0 0.0
        %608 = vmatmul.mubr.f32.gmra.mxu0 %v386
        %v609 = vpop.f32.mrf.mxu0
        %v610 = vadd.f32 0.0, %v609
        %v611 = vpop.f32.mrf.mxu0
        %612 = vdwg.mxu0
        %v613 = vmax.f32 %v455, %v475
        %v614 = vmax.f32 %v460, %v480
        %v615 = vmax.f32 %v465, %v485
        %v616 = vmax.f32 %v470, %v490
        %v617 = vmax.f32 %v495, %v515
        %v618 = vmax.f32 %v500, %v520
        %v619 = vmax.f32 %v505, %v525
        %v620 = vmax.f32 %v510, %v530
        %v621 = vmax.f32 %v613, %v617
        %v622 = vmax.f32 %v614, %v618
        %v623 = vmax.f32 %v615, %v619
        %v624 = vmax.f32 %v616, %v620
        %v625 = vmax.f32 %v535, %v555
        %v626 = vmax.f32 %v540, %v560
        %v627 = vmax.f32 %v545, %v565
        %v628 = vmax.f32 %v550, %v570
        %v629 = vmax.f32 %v575, %v595
        %v630 = vmax.f32 %v580, %v600
        %v631 = vmax.f32 %v585, %v605
        %v632 = vmax.f32 %v590, %v610
        %v633 = vmax.f32 %v625, %v629
        %v634 = vmax.f32 %v626, %v630
        %v635 = vmax.f32 %v627, %v631
        %v636 = vmax.f32 %v628, %v632
        %v637 = vmax.f32 %v621, %v633
        %v638 = vmax.f32 %v622, %v634
        %v639 = vmax.f32 %v623, %v635
        %v640 = vmax.f32 %v624, %v636
        %v641 = vld [vmem:[%s2] sm:$0xff]
        %v642 = vld [vmem:[%s2 + $0x8] sm:$0xff]
        %v643 = vld [vmem:[%s2 + $0x10] sm:$0xff]
        %v644 = vld [vmem:[%s2 + $0x18] sm:$0xff]
        %646 = vset.pattern.permute.xlu0 0
        %647 = vperm.xlu0 %646, %v641
        %v648 = vpop.permute.xlu0 %647
        %651 = vset.pattern.permute.xlu0 0
        %652 = vperm.xlu0 %651, %v642
        %v653 = vpop.permute.xlu0 %652
        %656 = vset.pattern.permute.xlu0 0
        %657 = vperm.xlu0 %656, %v643
        %v658 = vpop.permute.xlu0 %657
        %661 = vset.pattern.permute.xlu0 0
        %662 = vperm.xlu0 %661, %v644
        %v663 = vpop.permute.xlu0 %662
        %v665 = vadd.f32 %v637, %v648
        %v666 = vadd.f32 %v638, %v653
        %v667 = vadd.f32 %v639, %v658
        %v668 = vadd.f32 %v640, %v663
        %v669 = vmax.f32 %v665, 0.0
        %v670 = vmax.f32 %v666, 0.0
        %v671 = vmax.f32 %v667, 0.0
        %v672 = vmax.f32 %v668, 0.0
        %v673 = vld [vmem:[%s3] sm:$0xff]
        %v674 = vld [vmem:[%s4] sm:$0xff]
        %676 = vset.pattern.permute.xlu0 0
        %677 = vperm.xlu0 %676, %v674
        %v678 = vpop.permute.xlu0 %677
        %vm680 = vcmask 261120
        %v682 = vsel %vm680, %v673, 0
        %684 = vmatprep.subr.mxu0 0.0
        %685 = vmatpush1.msra.mxu0 0.0
        %686 = vmatprep.subr.mxu0 0.0
        %687 = vmatpush1.msra.mxu0 0.0
        %688 = vmatprep.subr.mxu0 0.0
        %689 = vmatpush1.msra.mxu0 0.0
        %690 = vmatprep.subr.mxu0 0.0
        %691 = vmatpush1.msra.mxu0 0.0
        %692 = vmatprep.subr.mxu0 0.0
        %693 = vmatpush1.msra.mxu0 0.0
        %694 = vmatprep.subr.mxu0 0.0
        %695 = vmatpush1.msra.mxu0 0.0
        %696 = vmatprep.subr.mxu0 0.0
        %697 = vmatpush1.msra.mxu0 0.0
        %698 = vmatprep.subr.mxu0 0.0
        %699 = vmatpush1.msra.mxu0 0.0
        %700 = vmatprep.subr.mxu0 0.0
        %701 = vmatpush1.msra.mxu0 0.0
        %702 = vmatprep.subr.mxu0 0.0
        %703 = vmatpush1.msra.mxu0 0.0
        %704 = vmatprep.subr.mxu0 0.0
        %705 = vmatpush1.msra.mxu0 0.0
        %706 = vmatprep.subr.mxu0 0.0
        %707 = vmatpush1.msra.mxu0 0.0
        %708 = vmatprep.subr.mxu0 0.0
        %709 = vmatpush1.msra.mxu0 %v672
        %710 = vmatprep.subr.mxu0 0.0
        %711 = vmatpush1.msra.mxu0 %v671
        %712 = vmatprep.subr.mxu0 0.0
        %713 = vmatpush1.msra.mxu0 %v670
        %714 = vmatprep.subr.mxu0 0.0
        %715 = vmatpush1.msra.mxu0 %v669
        %716 = vmatprep.subr.mxu0 0.0
        %717 = vmatpush2.msra.mxu0 0.0
        %718 = vmatprep.subr.mxu0 0.0
        %719 = vmatpush2.msra.mxu0 0.0
        %720 = vmatprep.subr.mxu0 0.0
        %721 = vmatpush2.msra.mxu0 0.0
        %722 = vmatprep.subr.mxu0 0.0
        %723 = vmatpush2.msra.mxu0 0.0
        %724 = vmatprep.subr.mxu0 0.0
        %725 = vmatpush2.msra.mxu0 0.0
        %726 = vmatprep.subr.mxu0 0.0
        %727 = vmatpush2.msra.mxu0 0.0
        %728 = vmatprep.subr.mxu0 0.0
        %729 = vmatpush2.msra.mxu0 0.0
        %730 = vmatprep.subr.mxu0 0.0
        %731 = vmatpush2.msra.mxu0 0.0
        %732 = vmatprep.subr.mxu0 0.0
        %733 = vmatpush2.msra.mxu0 0.0
        %734 = vmatprep.subr.mxu0 0.0
        %735 = vmatpush2.msra.mxu0 0.0
        %736 = vmatprep.subr.mxu0 0.0
        %737 = vmatpush2.msra.mxu0 0.0
        %738 = vmatprep.subr.mxu0 0.0
        %739 = vmatpush2.msra.mxu0 0.0
        %740 = vmatprep.subr.mxu0 0.0
        %741 = vmatpush2.msra.mxu0 0.0
        %742 = vmatprep.subr.mxu0 0.0
        %743 = vmatpush2.msra.mxu0 0.0
        %744 = vmatprep.subr.mxu0 0.0
        %745 = vmatpush2.msra.mxu0 0.0
        %746 = vmatprep.subr.mxu0 0.0
        %747 = vmatpush2.msra.mxu0 0.0
        %748 = vmatprep.mubr.f32.mxu0 0.0
        %749 = vmatmul.mubr.f32.gmra.mxu0 %v682
        %v750 = vpop.f32.mrf.mxu0
        %v751 = vadd.f32 %v678, %v750
        %v752 = vpop.f32.mrf.mxu0
        %753 = vdwg.mxu0
        %v754 = vxor.u32 %v751, 2147483648
        %v755 = vmul.f32 %v754, 1.442695
        %v756 = vpow.pop %v755
        %v757 = vadd.f32 %v756, 1.0
        %v758 = vrcp.pop %v757
        %v759 = vmul.f32 1.0, %v758
        %760 = vst.msk [vmem:[%s241] sm:$0xff] %vm291, %v759
        %s761 = sand.u32 %s153, 1
        %s762 = scalar_lea.sflag [#allocation3], %s761
        %s763 = sand.u32 %s153, 1
        %s764 = smul.addr %s763, 8
        %s765 = scalar_lea.vmem [#allocation2], %s764
        // Predicated region
        $region41: #{tpu_custom_call.1} parent=39 // pred_check
          %p766 = pneg %p163
        $region42: #{tpu_custom_call.1} parent=39 // pred_check_branch
          %768 = sbr.rel (%p766) target = $region44
        $region43: #{tpu_custom_call.1} parent=39 // pred_region
          %s770 = ssub.s32 128, 128
          %771 = vsyncadd %s762, %s770
          %s772 = sadd.s32 %s24, %s23
          %s773 = smul.addr %s772, 128
          %s774 = scalar_lea.hbm %s5, %s773
          %s776 = sshll.u32 %s765, 4
          %s777 = int_to_ptr.vmem [resolvable:$true] %s776
          %779 = dma.vmem_to_hbm [thread:$0]  %s777, 128, %s774, %s762
        $region44: #{tpu_custom_call.1} parent=39 // pred_fallthru
          _
      $region40: #{tpu_custom_call.1} parent=5 // pred_fallthru
        _
      %p780 = scmp.le.s32.totalorder 2, %s14
      // Predicated region
      $region45: #{tpu_custom_call.1} parent=5 // pred_check
        %p781 = pneg %p780
      $region46: #{tpu_custom_call.1} parent=5 // pred_check_branch
        %783 = sbr.rel (%p781) target = $region48
      $region47: #{tpu_custom_call.1} parent=5 // pred_region
        %s784 = ssub.s32 %s14, 2
        // Predicated region
        $region49: #{tpu_custom_call.1} parent=47 // pred_check
          %p785 = pneg %p169
        $region50: #{tpu_custom_call.1} parent=47 // pred_check_branch
          %787 = sbr.rel (%p785) target = $region52
        $region51: #{tpu_custom_call.1} parent=47 // pred_region
          %s788 = sand.u32 %s154, 1
          %s789 = scalar_lea.sflag [#allocation3], %s788
          %s790 = sand.u32 %s154, 1
          %s791 = smul.addr %s790, 8
          %s792 = scalar_lea.vmem [#allocation2], %s791
          %793 = dma.done %s789, 128
        $region52: #{tpu_custom_call.1} parent=47 // pred_fallthru
          _
      $region48: #{tpu_custom_call.1} parent=5 // pred_fallthru
        _
    $region6: #{tpu_custom_call.1} parent=1 // loop_footer
      %s18 = sadd.s32 1, %s14
    $region7: #{tpu_custom_call.1} parent=1 // loop_footer_branch
      %13 = sbr.rel target = $region3
    $region8: #{tpu_custom_call.1} parent=1 // loop_exit
      _
    %794 = vsyncpa [#allocation3], 1
    %s795 = scalar_lea.sflag [#allocation3], 1
    %796 = vsyncpa %s795, 1

</llo_original>
